<compile_context>
chip_gen: v5e
topology: v5e:2x2
jax: 0.10.0
libtpu: 0.0.40
codegen_flags: <defaults>
</compile_context>

<pallas_src>
import math
from functools import partial

import jax
import jax.numpy as jnp
from jax.experimental import pallas as pl
from jax.experimental.pallas import tpu as pltpu


# ----------------------------------------------------------------------------
# Kernel
# ----------------------------------------------------------------------------
def _make_kernel(silu):
    act = jax.nn.silu if silu else (lambda v: jnp.maximum(v, 0.0))

    def kernel(x_ref, ph_ref, pw_ref, eh_ref, ew_ref,
               w1_ref, b1_ref, wh_ref, bh_ref, ww_ref, bw_ref, o_ref):
        # Streamed block: (R, HW) with R = Nb*C rows, lane-dense along HW.
        x = x_ref[...].astype(jnp.float32)

        # Pooled means over W / over H: one MXU dot each (full-row fill).
        y_h = jnp.dot(x, ph_ref[...], preferred_element_type=jnp.float32)   # (R, H)
        y_w = jnp.dot(x, pw_ref[...], preferred_element_type=jnp.float32)   # (R, W)

        # conv1 (BN scale folded into weight) + folded BN bias + activation,
        # batched over all Nb images via a block-diagonal weight.
        y1_h = act(jnp.dot(w1_ref[...], y_h,
                           preferred_element_type=jnp.float32) + b1_ref[...])  # (Nb*M, H)
        y1_w = act(jnp.dot(w1_ref[...], y_w,
                           preferred_element_type=jnp.float32) + b1_ref[...])  # (Nb*M, W)

        # conv_h / conv_w (block-diagonal) + sigmoid gates.
        att_h = jax.nn.sigmoid(jnp.dot(wh_ref[...], y1_h,
                                       preferred_element_type=jnp.float32) + bh_ref[...])  # (R, H)
        att_w = jax.nn.sigmoid(jnp.dot(ww_ref[...], y1_w,
                                       preferred_element_type=jnp.float32) + bw_ref[...])  # (R, W)

        # Expand gates back to lane-dense (R, HW) with constant selectors
        # (MXU is idle at this arithmetic intensity; avoids any relayout).
        gate = (jnp.dot(att_h, eh_ref[...], preferred_element_type=jnp.float32) *
                jnp.dot(att_w, ew_ref[...], preferred_element_type=jnp.float32))

        o_ref[...] = (x * gate).astype(o_ref.dtype)

    return kernel


# ----------------------------------------------------------------------------
# Generation-aware configuration
# ----------------------------------------------------------------------------
def _tpu_config():
    try:
        vmem_cap = pltpu.get_tpu_info().vmem_capacity_bytes
    except Exception:
        vmem_cap = 128 * 1024 * 1024
    if vmem_cap <= 64 * 1024 * 1024:
        # v7x-class: half the VMEM, 2 TensorCores -> keep >=2 steps per core.
        return dict(max_block_bytes=4 << 20, vmem_limit=48 << 20, min_steps=4)
    # v5e / v6e: 128 MiB physical VMEM, single TC.
    return dict(max_block_bytes=8 << 20, vmem_limit=64 << 20, min_steps=2)


def _pick_nb(N, C, HW, itemsize, M, cfg):
    """Images per grid step: as large as the (generation-specific) VMEM block
    budget allows, while keeping >= min_steps grid steps, bounded kron-weight
    residents, MXU-row-aligned Nb*C when possible, and Nb*C % 8 == 0."""
    per_image = max(1, C * HW * itemsize)
    cap_bytes = max(1, cfg["max_block_bytes"] // per_image)
    cap_steps = max(1, -(-N // cfg["min_steps"]))                 # ceil(N / min_steps)
    cap_kron = max(1, int(math.sqrt((4 << 20) / max(1, 12 * M * C))))
    nb = max(1, min(cap_bytes, cap_steps, cap_kron, N))

    # Prefer Nb*C that fills full MXU row passes (256 on v6e/v7x, 128 on v5e).
    best = None
    for row_mult in (256, 128):
        for cand in range(nb, 0, -1):
            if (cand * C) % row_mult == 0:
                best = cand
                break
        if best is not None:
            break
    if best is not None:
        nb = best

    # Sublane alignment of the merged (Nb*C) row dimension.
    m8 = 8 // math.gcd(C, 8)
    nb = max(m8, (nb // m8) * m8)
    return nb


def _pool_and_selector_mats(H, W, dtype=jnp.float32):
    HW = H * W
    l = jnp.arange(HW)
    h_of_l = l // W
    w_of_l = l % W
    ph = (h_of_l[:, None] == jnp.arange(H)[None, :]).astype(dtype) / float(W)   # (HW, H)
    pw = (w_of_l[:, None] == jnp.arange(W)[None, :]).astype(dtype) / float(H)   # (HW, W)
    eh = (jnp.arange(H)[:, None] == h_of_l[None, :]).astype(dtype)              # (H, HW)
    ew = (jnp.arange(W)[:, None] == w_of_l[None, :]).astype(dtype)              # (W, HW)
    return ph, pw, eh, ew


# ----------------------------------------------------------------------------
# Wrapper
# ----------------------------------------------------------------------------
@partial(jax.jit, static_argnames=("silu", "stream_dtype"))
def coord_att_pallas(x, w1, bn_scale, bn_bias, wh, bh, ww, bw, *,
                     silu=False, stream_dtype=None):
    N, C, H, W = x.shape
    M = w1.shape[0]
    HW = H * W
    sdtype = jnp.dtype(stream_dtype) if stream_dtype is not None else jnp.dtype(x.dtype)

    cfg = _tpu_config()
    nb = _pick_nb(N, C, HW, sdtype.itemsize, M, cfg)
    steps = -(-N // nb)                      # cdiv: partial batch handled by padding
    R = nb * C                               # streamed rows per grid step

    # Fold BN (inference) scale into conv1 weight; build block-diagonal weights
    # so conv1 / conv_h / conv_w over the whole Nb-image block are single dots.
    w1f = (bn_scale * w1).astype(jnp.float32)                    # (M, C)
    eye = jnp.eye(nb, dtype=jnp.float32)
    w1_blk = jnp.kron(eye, w1f)                                  # (nb*M, nb*C)
    wh_blk = jnp.kron(eye, wh.astype(jnp.float32))               # (nb*C, nb*M)
    ww_blk = jnp.kron(eye, ww.astype(jnp.float32))               # (nb*C, nb*M)
    b1_blk = jnp.tile(bn_bias.astype(jnp.float32), (nb, 1))      # (nb*M, 1)
    bh_blk = jnp.tile(bh.astype(jnp.float32), (nb, 1))           # (nb*C, 1)
    bw_blk = jnp.tile(bw.astype(jnp.float32), (nb, 1))           # (nb*C, 1)

    ph, pw_mat, eh_mat, ew_mat = _pool_and_selector_mats(H, W)

    # Lane-dense 2-D slab; pad rows so the last grid step is a full block.
    x2 = x.reshape(N * C, HW).astype(sdtype)
    rows = N * C
    rows_pad = steps * R
    if rows_pad > rows:
        x2 = jnp.pad(x2, ((0, rows_pad - rows), (0, 0)))

    def resident(a):
        nd = a.ndim
        return pl.BlockSpec(a.shape, lambda n, _nd=nd: (0,) * _nd)

    cost = pl.CostEstimate(
        flops=int(4 * N * C * HW * (H + W) + 4 * N * M * C * (H + W) + 3 * N * C * HW),
        transcendentals=int(N * C * (H + W)),
        bytes_accessed=int(2 * rows_pad * HW * sdtype.itemsize),
    )

    out2 = pl.pallas_call(
        _make_kernel(silu),
        out_shape=jax.ShapeDtypeStruct((rows_pad, HW), sdtype),
        grid=(steps,),
        in_specs=[
            pl.BlockSpec((R, HW), lambda n: (n, 0)),    # x (streamed)
            resident(ph), resident(pw_mat),             # pooling matrices
            resident(eh_mat), resident(ew_mat),         # gate-expansion selectors
            resident(w1_blk), resident(b1_blk),         # conv1 (BN folded) + bias
            resident(wh_blk), resident(bh_blk),         # conv_h
            resident(ww_blk), resident(bw_blk),         # conv_w
        ],
        out_specs=pl.BlockSpec((R, HW), lambda n: (n, 0)),
        compiler_params=pltpu.CompilerParams(
            dimension_semantics=("parallel",),
            vmem_limit_bytes=cfg["vmem_limit"],
        ),
        cost_estimate=cost,
    )(x2, ph, pw_mat, eh_mat, ew_mat, w1_blk, b1_blk, wh_blk, bh_blk, ww_blk, bw_blk)

    return out2[:rows].reshape(N, C, H, W)


# ----------------------------------------------------------------------------
# Pure-JAX reference (PyTorch forward, BN in eval mode, ReLU activation)
# ----------------------------------------------------------------------------
def coord_att_reference(x, w1, bn_scale, bn_bias, wh, bh, ww, bw):
    N, C, H, W = x.shape
    x_h = jnp.mean(x, axis=3)                            # (N, C, H)
    x_w = jnp.mean(x, axis=2)                            # (N, C, W)
    y = jnp.concatenate([x_h, x_w], axis=2)              # (N, C, H+W)
    y1 = jnp.einsum('mc,ncl->nml', w1, y)
    y1 = jnp.maximum(y1 * bn_scale[None, :, :] + bn_bias[None, :, :], 0.0)
    y_h, y_w = y1[:, :, :H], y1[:, :, H:]
    att_h = jax.nn.sigmoid(jnp.einsum('cm,nmh->nch', wh, y_h) + bh[None, :, :])
    att_w = jax.nn.sigmoid(jnp.einsum('cm,nmw->ncw', ww, y_w) + bw[None, :, :])
    return x * att_h[:, :, :, None] * att_w[:, :, None, :]


# ----------------------------------------------------------------------------
# Demo / self-test
# ----------------------------------------------------------------------------
if __name__ == "__main__":
    # Shapes consistent with the module: gate_channels=32, reduction_ratio=16.
    N, C, H, W = 2, 32, 16, 16
    reduction_ratio = 16
    M = C // reduction_ratio   # mid channels = 2

    key = jax.random.PRNGKey(0)
    k = jax.random.split(key, 8)

    x = jax.random.normal(k[0], (N, C, H, W), dtype=jnp.float32)

    # 1x1 conv weights flattened to 2-D.
    w1 = 0.2 * jax.random.normal(k[1], (M, C), dtype=jnp.float32)   # conv1 (no bias)
    wh = 0.2 * jax.random.normal(k[2], (C, M), dtype=jnp.float32)   # conv_h weight
    bh = 0.1 * jax.random.normal(k[3], (C, 1), dtype=jnp.float32)   # conv_h bias
    ww = 0.2 * jax.random.normal(k[4], (C, M), dtype=jnp.float32)   # conv_w weight
    bw = 0.1 * jax.random.normal(k[5], (C, 1), dtype=jnp.float32)   # conv_w bias

    # BatchNorm2d inference: scale = gamma/sqrt(var+eps), bias = beta - mean*scale.
    eps = 1e-5
    gamma = 1.0 + 0.1 * jax.random.normal(k[6], (M,), dtype=jnp.float32)
    beta = 0.1 * jax.random.normal(k[7], (M,), dtype=jnp.float32)
    running_mean = jnp.zeros((M,), dtype=jnp.float32)
    running_var = jnp.ones((M,), dtype=jnp.float32)
    bn_scale = (gamma / jnp.sqrt(running_var + eps)).reshape(M, 1)
    bn_bias = (beta - running_mean * bn_scale[:, 0]).reshape(M, 1)

    ref = coord_att_reference(x, w1, bn_scale, bn_bias, wh, bh, ww, bw)

    # f32 streaming path.
    out = coord_att_pallas(x, w1, bn_scale, bn_bias, wh, bh, ww, bw)
    out = jax.block_until_ready(out)
    assert out.shape == (N, C, H, W)
    assert jnp.allclose(out, ref, atol=1e-4, rtol=1e-4), "f32 mismatch vs reference"

    # Non-divisible batch exercises the zero-padded partial-block path.
    N3 = 3
    x3 = jax.random.normal(k[0], (N3, C, H, W), dtype=jnp.float32)
    out3 = jax.block_until_ready(
        coord_att_pallas(x3, w1, bn_scale, bn_bias, wh, bh, ww, bw))
    ref3 = coord_att_reference(x3, w1, bn_scale, bn_bias, wh, bh, ww, bw)
    assert out3.shape == (N3, C, H, W)
    assert jnp.allclose(out3, ref3, atol=1e-4, rtol=1e-4), "odd-N mismatch vs reference"

    # bf16 streaming path (half the HBM traffic; loose tolerance).
    out_bf16 = jax.block_until_ready(
        coord_att_pallas(x, w1, bn_scale, bn_bias, wh, bh, ww, bw,
                         stream_dtype=jnp.bfloat16))
    assert jnp.allclose(out_bf16.astype(jnp.float32), ref, atol=1e-1, rtol=1e-1), \
        "bf16 mismatch vs reference"

    print("KERNEL_OK")
</pallas_src>

<mosaic_0001>
module attributes {stable_mosaic.version = 11 : i64} {
  func.func @kernel(%arg0: i32, %arg1: memref<32x256xf32, #tpu.memory_space<vmem>>, %arg2: memref<256x16xf32, #tpu.memory_space<vmem>>, %arg3: memref<256x16xf32, #tpu.memory_space<vmem>>, %arg4: memref<16x256xf32, #tpu.memory_space<vmem>>, %arg5: memref<16x256xf32, #tpu.memory_space<vmem>>, %arg6: memref<2x32xf32, #tpu.memory_space<vmem>>, %arg7: memref<2x1xf32, #tpu.memory_space<vmem>>, %arg8: memref<32x2xf32, #tpu.memory_space<vmem>>, %arg9: memref<32x1xf32, #tpu.memory_space<vmem>>, %arg10: memref<32x2xf32, #tpu.memory_space<vmem>>, %arg11: memref<32x1xf32, #tpu.memory_space<vmem>>, %arg12: memref<32x256xf32, #tpu.memory_space<vmem>>) attributes {dimension_semantics = [#tpu.dimension_semantics<parallel>], iteration_bounds = array<i64: 2>, scalar_prefetch = 0 : i64, scratch_operands = 0 : i64, tpu.core_type = #tpu.core_type<tc>, window_params = [{transform_indices = @transform_0, window_bounds = array<i64: 32, 256>}, {pipeline_mode = #tpu.pipeline_mode<synchronous>, transform_indices = @transform_1, window_bounds = array<i64: 256, 16>}, {pipeline_mode = #tpu.pipeline_mode<synchronous>, transform_indices = @transform_2, window_bounds = array<i64: 256, 16>}, {pipeline_mode = #tpu.pipeline_mode<synchronous>, transform_indices = @transform_3, window_bounds = array<i64: 16, 256>}, {pipeline_mode = #tpu.pipeline_mode<synchronous>, transform_indices = @transform_4, window_bounds = array<i64: 16, 256>}, {pipeline_mode = #tpu.pipeline_mode<synchronous>, transform_indices = @transform_5, window_bounds = array<i64: 2, 32>}, {pipeline_mode = #tpu.pipeline_mode<synchronous>, transform_indices = @transform_6, window_bounds = array<i64: 2, 1>}, {pipeline_mode = #tpu.pipeline_mode<synchronous>, transform_indices = @transform_7, window_bounds = array<i64: 32, 2>}, {pipeline_mode = #tpu.pipeline_mode<synchronous>, transform_indices = @transform_8, window_bounds = array<i64: 32, 1>}, {pipeline_mode = #tpu.pipeline_mode<synchronous>, transform_indices = @transform_9, window_bounds = array<i64: 32, 2>}, {pipeline_mode = #tpu.pipeline_mode<synchronous>, transform_indices = @transform_10, window_bounds = array<i64: 32, 1>}, {transform_indices = @transform_11, window_bounds = array<i64: 32, 256>}]} {
    %c0 = arith.constant 0 : index
    %c0_0 = arith.constant 0 : index
    %0 = vector.load %arg1[%c0, %c0_0] : memref<32x256xf32, #tpu.memory_space<vmem>>, vector<32x256xf32>
    %c0_1 = arith.constant 0 : index
    %c0_2 = arith.constant 0 : index
    %1 = vector.load %arg2[%c0_1, %c0_2] : memref<256x16xf32, #tpu.memory_space<vmem>>, vector<256x16xf32>
    %cst = arith.constant dense<0.000000e+00> : vector<32x16xf32>
    %2 = tpu.matmul %0, %1, %cst {dimension_numbers = #tpu.dot_dimension_numbers<[1], [0], [0], [1], [0, 0, 1, 1], [], []>} : vector<32x256xf32>, vector<256x16xf32>, vector<32x16xf32> -> vector<32x16xf32>
    %c0_3 = arith.constant 0 : index
    %c0_4 = arith.constant 0 : index
    %3 = vector.load %arg3[%c0_3, %c0_4] : memref<256x16xf32, #tpu.memory_space<vmem>>, vector<256x16xf32>
    %cst_5 = arith.constant dense<0.000000e+00> : vector<32x16xf32>
    %4 = tpu.matmul %0, %3, %cst_5 {dimension_numbers = #tpu.dot_dimension_numbers<[1], [0], [0], [1], [0, 0, 1, 1], [], []>} : vector<32x256xf32>, vector<256x16xf32>, vector<32x16xf32> -> vector<32x16xf32>
    %c0_6 = arith.constant 0 : index
    %c0_7 = arith.constant 0 : index
    %5 = vector.load %arg6[%c0_6, %c0_7] : memref<2x32xf32, #tpu.memory_space<vmem>>, vector<2x32xf32>
    %cst_8 = arith.constant dense<0.000000e+00> : vector<2x16xf32>
    %6 = tpu.matmul %5, %2, %cst_8 {dimension_numbers = #tpu.dot_dimension_numbers<[1], [0], [0], [1], [0, 0, 1, 1], [], []>} : vector<2x32xf32>, vector<32x16xf32>, vector<2x16xf32> -> vector<2x16xf32>
    %c0_9 = arith.constant 0 : index
    %c0_10 = arith.constant 0 : index
    %7 = vector.load %arg7[%c0_9, %c0_10] : memref<2x1xf32, #tpu.memory_space<vmem>>, vector<2x1xf32>
    %8 = vector.broadcast %7 : vector<2x1xf32> to vector<2x16xf32>
    %9 = arith.addf %6, %8 : vector<2x16xf32>
    %cst_11 = arith.constant 0.000000e+00 : f32
    %10 = vector.broadcast %cst_11 : f32 to vector<2x16xf32>
    %11 = arith.maximumf %9, %10 : vector<2x16xf32>
    %c0_12 = arith.constant 0 : index
    %c0_13 = arith.constant 0 : index
    %12 = vector.load %arg6[%c0_12, %c0_13] : memref<2x32xf32, #tpu.memory_space<vmem>>, vector<2x32xf32>
    %cst_14 = arith.constant dense<0.000000e+00> : vector<2x16xf32>
    %13 = tpu.matmul %12, %4, %cst_14 {dimension_numbers = #tpu.dot_dimension_numbers<[1], [0], [0], [1], [0, 0, 1, 1], [], []>} : vector<2x32xf32>, vector<32x16xf32>, vector<2x16xf32> -> vector<2x16xf32>
    %c0_15 = arith.constant 0 : index
    %c0_16 = arith.constant 0 : index
    %14 = vector.load %arg7[%c0_15, %c0_16] : memref<2x1xf32, #tpu.memory_space<vmem>>, vector<2x1xf32>
    %15 = vector.broadcast %14 : vector<2x1xf32> to vector<2x16xf32>
    %16 = arith.addf %13, %15 : vector<2x16xf32>
    %cst_17 = arith.constant 0.000000e+00 : f32
    %17 = vector.broadcast %cst_17 : f32 to vector<2x16xf32>
    %18 = arith.maximumf %16, %17 : vector<2x16xf32>
    %c0_18 = arith.constant 0 : index
    %c0_19 = arith.constant 0 : index
    %19 = vector.load %arg8[%c0_18, %c0_19] : memref<32x2xf32, #tpu.memory_space<vmem>>, vector<32x2xf32>
    %cst_20 = arith.constant dense<0.000000e+00> : vector<32x16xf32>
    %20 = tpu.matmul %19, %11, %cst_20 {dimension_numbers = #tpu.dot_dimension_numbers<[1], [0], [0], [1], [0, 0, 1, 1], [], []>} : vector<32x2xf32>, vector<2x16xf32>, vector<32x16xf32> -> vector<32x16xf32>
    %c0_21 = arith.constant 0 : index
    %c0_22 = arith.constant 0 : index
    %21 = vector.load %arg9[%c0_21, %c0_22] : memref<32x1xf32, #tpu.memory_space<vmem>>, vector<32x1xf32>
    %22 = vector.broadcast %21 : vector<32x1xf32> to vector<32x16xf32>
    %23 = arith.addf %20, %22 : vector<32x16xf32>
    %24 = arith.negf %23 : vector<32x16xf32>
    %25 = math.exp %24 : vector<32x16xf32>
    %cst_23 = arith.constant 1.000000e+00 : f32
    %26 = vector.broadcast %cst_23 : f32 to vector<32x16xf32>
    %27 = arith.addf %26, %25 : vector<32x16xf32>
    %28 = arith.divf %26, %27 : vector<32x16xf32>
    %c0_24 = arith.constant 0 : index
    %c0_25 = arith.constant 0 : index
    %29 = vector.load %arg10[%c0_24, %c0_25] : memref<32x2xf32, #tpu.memory_space<vmem>>, vector<32x2xf32>
    %cst_26 = arith.constant dense<0.000000e+00> : vector<32x16xf32>
    %30 = tpu.matmul %29, %18, %cst_26 {dimension_numbers = #tpu.dot_dimension_numbers<[1], [0], [0], [1], [0, 0, 1, 1], [], []>} : vector<32x2xf32>, vector<2x16xf32>, vector<32x16xf32> -> vector<32x16xf32>
    %c0_27 = arith.constant 0 : index
    %c0_28 = arith.constant 0 : index
    %31 = vector.load %arg11[%c0_27, %c0_28] : memref<32x1xf32, #tpu.memory_space<vmem>>, vector<32x1xf32>
    %32 = vector.broadcast %31 : vector<32x1xf32> to vector<32x16xf32>
    %33 = arith.addf %30, %32 : vector<32x16xf32>
    %34 = arith.negf %33 : vector<32x16xf32>
    %35 = math.exp %34 : vector<32x16xf32>
    %cst_29 = arith.constant 1.000000e+00 : f32
    %36 = vector.broadcast %cst_29 : f32 to vector<32x16xf32>
    %37 = arith.addf %36, %35 : vector<32x16xf32>
    %38 = arith.divf %36, %37 : vector<32x16xf32>
    %c0_30 = arith.constant 0 : index
    %c0_31 = arith.constant 0 : index
    %39 = vector.load %arg4[%c0_30, %c0_31] : memref<16x256xf32, #tpu.memory_space<vmem>>, vector<16x256xf32>
    %cst_32 = arith.constant dense<0.000000e+00> : vector<32x256xf32>
    %40 = tpu.matmul %28, %39, %cst_32 {dimension_numbers = #tpu.dot_dimension_numbers<[1], [0], [0], [1], [0, 0, 1, 1], [], []>} : vector<32x16xf32>, vector<16x256xf32>, vector<32x256xf32> -> vector<32x256xf32>
    %c0_33 = arith.constant 0 : index
    %c0_34 = arith.constant 0 : index
    %41 = vector.load %arg5[%c0_33, %c0_34] : memref<16x256xf32, #tpu.memory_space<vmem>>, vector<16x256xf32>
    %cst_35 = arith.constant dense<0.000000e+00> : vector<32x256xf32>
    %42 = tpu.matmul %38, %41, %cst_35 {dimension_numbers = #tpu.dot_dimension_numbers<[1], [0], [0], [1], [0, 0, 1, 1], [], []>} : vector<32x16xf32>, vector<16x256xf32>, vector<32x256xf32> -> vector<32x256xf32>
    %43 = arith.mulf %40, %42 : vector<32x256xf32>
    %44 = arith.mulf %0, %43 : vector<32x256xf32>
    %c0_36 = arith.constant 0 : index
    %c0_37 = arith.constant 0 : index
    %45 = vector.load %arg12[%c0_36, %c0_37] : memref<32x256xf32, #tpu.memory_space<vmem>>, vector<32x256xf32>
    tpu.vector_store %arg12[%c0_36, %c0_37], %44 {strides = array<i32>} : memref<32x256xf32, #tpu.memory_space<vmem>>, vector<32x256xf32>,
    return
  }
  func.func @transform_0(%arg0: i32) -> (i32, i32) {
    %c0_i32 = arith.constant 0 : i32
    %c0_i32_0 = arith.constant 0 : i32
    return %arg0, %c0_i32 : i32, i32
  }
  func.func @transform_1(%arg0: i32) -> (i32, i32) {
    %c0_i32 = arith.constant 0 : i32
    %c0_i32_0 = arith.constant 0 : i32
    %c0_i32_1 = arith.constant 0 : i32
    return %c0_i32, %c0_i32_0 : i32, i32
  }
  func.func @transform_2(%arg0: i32) -> (i32, i32) {
    %c0_i32 = arith.constant 0 : i32
    %c0_i32_0 = arith.constant 0 : i32
    %c0_i32_1 = arith.constant 0 : i32
    return %c0_i32, %c0_i32_0 : i32, i32
  }
  func.func @transform_3(%arg0: i32) -> (i32, i32) {
    %c0_i32 = arith.constant 0 : i32
    %c0_i32_0 = arith.constant 0 : i32
    %c0_i32_1 = arith.constant 0 : i32
    return %c0_i32, %c0_i32_0 : i32, i32
  }
  func.func @transform_4(%arg0: i32) -> (i32, i32) {
    %c0_i32 = arith.constant 0 : i32
    %c0_i32_0 = arith.constant 0 : i32
    %c0_i32_1 = arith.constant 0 : i32
    return %c0_i32, %c0_i32_0 : i32, i32
  }
  func.func @transform_5(%arg0: i32) -> (i32, i32) {
    %c0_i32 = arith.constant 0 : i32
    %c0_i32_0 = arith.constant 0 : i32
    %c0_i32_1 = arith.constant 0 : i32
    return %c0_i32, %c0_i32_0 : i32, i32
  }
  func.func @transform_6(%arg0: i32) -> (i32, i32) {
    %c0_i32 = arith.constant 0 : i32
    %c0_i32_0 = arith.constant 0 : i32
    %c0_i32_1 = arith.constant 0 : i32
    return %c0_i32, %c0_i32_0 : i32, i32
  }
  func.func @transform_7(%arg0: i32) -> (i32, i32) {
    %c0_i32 = arith.constant 0 : i32
    %c0_i32_0 = arith.constant 0 : i32
    %c0_i32_1 = arith.constant 0 : i32
    return %c0_i32, %c0_i32_0 : i32, i32
  }
  func.func @transform_8(%arg0: i32) -> (i32, i32) {
    %c0_i32 = arith.constant 0 : i32
    %c0_i32_0 = arith.constant 0 : i32
    %c0_i32_1 = arith.constant 0 : i32
    return %c0_i32, %c0_i32_0 : i32, i32
  }
  func.func @transform_9(%arg0: i32) -> (i32, i32) {
    %c0_i32 = arith.constant 0 : i32
    %c0_i32_0 = arith.constant 0 : i32
    %c0_i32_1 = arith.constant 0 : i32
    return %c0_i32, %c0_i32_0 : i32, i32
  }
  func.func @transform_10(%arg0: i32) -> (i32, i32) {
    %c0_i32 = arith.constant 0 : i32
    %c0_i32_0 = arith.constant 0 : i32
    %c0_i32_1 = arith.constant 0 : i32
    return %c0_i32, %c0_i32_0 : i32, i32
  }
  func.func @transform_11(%arg0: i32) -> (i32, i32) {
    %c0_i32 = arith.constant 0 : i32
    %c0_i32_0 = arith.constant 0 : i32
    return %arg0, %c0_i32 : i32, i32
  }
}

</mosaic_0001>

<llo_original>
// kernel: coord_att_pallas.1
$region0: #{coord_att_pallas.1}
  #allocation0 [shape = 'u32[]', space=smem, size = 0x4, offset = 0x4, fixed_abs, tag = 'smem constant byte address 0x4 - core index']
  #allocation1 [shape = 'u32[72,128]{1,0:T(1,128)}', space=vmem, size = 0x9000, scoped, tag = 'internal scratch']
  %s0 = inlined_call_operand.vmem [shape: f32[64,256], index: 0, kind: input, shape index: {}]
  %s1 = inlined_call_operand.vmem [shape: f32[256,16], index: 1, kind: input, shape index: {}]
  %s2 = inlined_call_operand.vmem [shape: f32[256,16], index: 2, kind: input, shape index: {}]
  %s3 = inlined_call_operand.vmem [shape: f32[16,256], index: 3, kind: input, shape index: {}]
  %s4 = inlined_call_operand.vmem [shape: f32[16,256], index: 4, kind: input, shape index: {}]
  %s5 = inlined_call_operand.vmem [shape: f32[2,32], index: 5, kind: input, shape index: {}]
  %s6 = inlined_call_operand.vmem [shape: f32[2,1], index: 6, kind: input, shape index: {}]
  %s7 = inlined_call_operand.vmem [shape: f32[32,2], index: 7, kind: input, shape index: {}]
  %s8 = inlined_call_operand.vmem [shape: f32[32,1], index: 8, kind: input, shape index: {}]
  %s9 = inlined_call_operand.vmem [shape: f32[32,2], index: 9, kind: input, shape index: {}]
  %s10 = inlined_call_operand.vmem [shape: f32[32,1], index: 10, kind: input, shape index: {}]
  %s11 = inlined_call_operand.vmem [shape: f32[64,256], index: 11, kind: output, shape index: {}]
  %s12 = sld [smem:[#allocation0]]
  $region77: #{coord_att_pallas.1} parent=0
    _
  %s14 = ssub.s32 1, %s12
  %s15 = scalar_select 0, %s14, %s12
  loop: start=0, step=1, limit=4
  $region2: #{coord_att_pallas.1} parent=0 // loop_pre_header
    _
  $region3: #{coord_att_pallas.1} parent=0 // loop_header
    %s17 = sphi 0, %s21
    %p18 = scmp.ge.s32.totalorder %s17, 4
    %s27 = sphi 0, %s29
    %s30 = sphi 0, %s27
    %s31 = sphi 0, %s30
    %s47 = sphi 0, %s31
    %s51 = sphi 0, %s51
    %s53 = sphi 0, %s51
    %s54 = sphi 0, %s53
    %s68 = sphi 0, %s54
    %s72 = sphi 0, %s72
    %s74 = sphi 0, %s72
    %s75 = sphi 0, %s74
    %s89 = sphi 0, %s75
    %s93 = sphi 0, %s93
    %s95 = sphi 0, %s93
    %s96 = sphi 0, %s95
    %s110 = sphi 0, %s96
    %s114 = sphi 0, %s114
    %s116 = sphi 0, %s114
    %s117 = sphi 0, %s116
    %s131 = sphi 0, %s117
    %s135 = sphi 0, %s135
    %s137 = sphi 0, %s135
    %s138 = sphi 0, %s137
    %s152 = sphi 0, %s138
    %s156 = sphi 0, %s156
    %s158 = sphi 0, %s156
    %s159 = sphi 0, %s158
    %s173 = sphi 0, %s159
    %s177 = sphi 0, %s177
    %s179 = sphi 0, %s177
    %s180 = sphi 0, %s179
    %s194 = sphi 0, %s180
    %s198 = sphi 0, %s198
    %s200 = sphi 0, %s198
    %s201 = sphi 0, %s200
    %s215 = sphi 0, %s201
    %s219 = sphi 0, %s219
    %s221 = sphi 0, %s219
    %s222 = sphi 0, %s221
    %s236 = sphi 0, %s222
    %s240 = sphi 0, %s240
    %s242 = sphi 0, %s240
    %s243 = sphi 0, %s242
    %s257 = sphi 0, %s243
    %s263 = sphi 0, %s265
    %s266 = sphi 0, %s263
    %s267 = sphi 0, %s266
    %s283 = sphi 0, %s267
  $region4: #{coord_att_pallas.1} parent=0 // loop_header_branch
    %20 = sbr.rel (%p18) target = $region8
  $region5: #{coord_att_pallas.1} parent=0 // loop_body
    %s22 = ssub.s32 %s17, 1
    %s23 = ssub.s32 %s17, 2
    %s24 = sadd.s32 %s17, 1
    %s25 = ssub.s32 %s17, %s24
    %p26 = scmp.eq.s32.totalorder %s25, 0
    %s28 = sadd.s32 %s27, 1
    %s29 = scalar_select %p26, %s27, %s28
    %p32 = pneg %p26
    %p33 = scmp.eq.s32.totalorder %s17, 1
    %p34 = por %p32, %p33
    %p35 = scmp.ne.s32.totalorder %s27, %s30
    %p36 = scmp.eq.s32.totalorder %s17, 0
    %p37 = por %p35, %p36
    %p38 = scmp.ne.s32.totalorder %s27, %s30
    %p39 = scmp.eq.s32.totalorder %s22, 1
    %p40 = por %p38, %p39
    %p41 = scmp.ne.s32.totalorder %s30, %s31
    %p42 = scmp.eq.s32.totalorder %s22, 0
    %p43 = por %p41, %p42
    %p44 = scmp.ne.s32.totalorder %s30, %s31
    %p45 = scmp.eq.s32.totalorder %s23, 1
    %p46 = por %p44, %p45
    %p48 = scmp.ne.s32.totalorder %s31, %s47
    %p49 = scmp.eq.s32.totalorder %s23, 0
    %p50 = por %p48, %p49
    %s52 = sadd.s32 %s51, 1
    %p55 = scmp.eq.s32.totalorder %s17, 1
    %p56 = scmp.ne.s32.totalorder %s51, %s53
    %p57 = scmp.eq.s32.totalorder %s17, 0
    %p58 = por %p56, %p57
    %p59 = scmp.ne.s32.totalorder %s51, %s53
    %p60 = scmp.eq.s32.totalorder %s22, 1
    %p61 = por %p59, %p60
    %p62 = scmp.ne.s32.totalorder %s53, %s54
    %p63 = scmp.eq.s32.totalorder %s22, 0
    %p64 = por %p62, %p63
    %p65 = scmp.ne.s32.totalorder %s53, %s54
    %p66 = scmp.eq.s32.totalorder %s23, 1
    %p67 = por %p65, %p66
    %p69 = scmp.ne.s32.totalorder %s54, %s68
    %p70 = scmp.eq.s32.totalorder %s23, 0
    %p71 = por %p69, %p70
    %s73 = sadd.s32 %s72, 1
    %p76 = scmp.eq.s32.totalorder %s17, 1
    %p77 = scmp.ne.s32.totalorder %s72, %s74
    %p78 = scmp.eq.s32.totalorder %s17, 0
    %p79 = por %p77, %p78
    %p80 = scmp.ne.s32.totalorder %s72, %s74
    %p81 = scmp.eq.s32.totalorder %s22, 1
    %p82 = por %p80, %p81
    %p83 = scmp.ne.s32.totalorder %s74, %s75
    %p84 = scmp.eq.s32.totalorder %s22, 0
    %p85 = por %p83, %p84
    %p86 = scmp.ne.s32.totalorder %s74, %s75
    %p87 = scmp.eq.s32.totalorder %s23, 1
    %p88 = por %p86, %p87
    %p90 = scmp.ne.s32.totalorder %s75, %s89
    %p91 = scmp.eq.s32.totalorder %s23, 0
    %p92 = por %p90, %p91
    %s94 = sadd.s32 %s93, 1
    %p97 = scmp.eq.s32.totalorder %s17, 1
    %p98 = scmp.ne.s32.totalorder %s93, %s95
    %p99 = scmp.eq.s32.totalorder %s17, 0
    %p100 = por %p98, %p99
    %p101 = scmp.ne.s32.totalorder %s93, %s95
    %p102 = scmp.eq.s32.totalorder %s22, 1
    %p103 = por %p101, %p102
    %p104 = scmp.ne.s32.totalorder %s95, %s96
    %p105 = scmp.eq.s32.totalorder %s22, 0
    %p106 = por %p104, %p105
    %p107 = scmp.ne.s32.totalorder %s95, %s96
    %p108 = scmp.eq.s32.totalorder %s23, 1
    %p109 = por %p107, %p108
    %p111 = scmp.ne.s32.totalorder %s96, %s110
    %p112 = scmp.eq.s32.totalorder %s23, 0
    %p113 = por %p111, %p112
    %s115 = sadd.s32 %s114, 1
    %p118 = scmp.eq.s32.totalorder %s17, 1
    %p119 = scmp.ne.s32.totalorder %s114, %s116
    %p120 = scmp.eq.s32.totalorder %s17, 0
    %p121 = por %p119, %p120
    %p122 = scmp.ne.s32.totalorder %s114, %s116
    %p123 = scmp.eq.s32.totalorder %s22, 1
    %p124 = por %p122, %p123
    %p125 = scmp.ne.s32.totalorder %s116, %s117
    %p126 = scmp.eq.s32.totalorder %s22, 0
    %p127 = por %p125, %p126
    %p128 = scmp.ne.s32.totalorder %s116, %s117
    %p129 = scmp.eq.s32.totalorder %s23, 1
    %p130 = por %p128, %p129
    %p132 = scmp.ne.s32.totalorder %s117, %s131
    %p133 = scmp.eq.s32.totalorder %s23, 0
    %p134 = por %p132, %p133
    %s136 = sadd.s32 %s135, 1
    %p139 = scmp.eq.s32.totalorder %s17, 1
    %p140 = scmp.ne.s32.totalorder %s135, %s137
    %p141 = scmp.eq.s32.totalorder %s17, 0
    %p142 = por %p140, %p141
    %p143 = scmp.ne.s32.totalorder %s135, %s137
    %p144 = scmp.eq.s32.totalorder %s22, 1
    %p145 = por %p143, %p144
    %p146 = scmp.ne.s32.totalorder %s137, %s138
    %p147 = scmp.eq.s32.totalorder %s22, 0
    %p148 = por %p146, %p147
    %p149 = scmp.ne.s32.totalorder %s137, %s138
    %p150 = scmp.eq.s32.totalorder %s23, 1
    %p151 = por %p149, %p150
    %p153 = scmp.ne.s32.totalorder %s138, %s152
    %p154 = scmp.eq.s32.totalorder %s23, 0
    %p155 = por %p153, %p154
    %s157 = sadd.s32 %s156, 1
    %p160 = scmp.eq.s32.totalorder %s17, 1
    %p161 = scmp.ne.s32.totalorder %s156, %s158
    %p162 = scmp.eq.s32.totalorder %s17, 0
    %p163 = por %p161, %p162
    %p164 = scmp.ne.s32.totalorder %s156, %s158
    %p165 = scmp.eq.s32.totalorder %s22, 1
    %p166 = por %p164, %p165
    %p167 = scmp.ne.s32.totalorder %s158, %s159
    %p168 = scmp.eq.s32.totalorder %s22, 0
    %p169 = por %p167, %p168
    %p170 = scmp.ne.s32.totalorder %s158, %s159
    %p171 = scmp.eq.s32.totalorder %s23, 1
    %p172 = por %p170, %p171
    %p174 = scmp.ne.s32.totalorder %s159, %s173
    %p175 = scmp.eq.s32.totalorder %s23, 0
    %p176 = por %p174, %p175
    %s178 = sadd.s32 %s177, 1
    %p181 = scmp.eq.s32.totalorder %s17, 1
    %p182 = scmp.ne.s32.totalorder %s177, %s179
    %p183 = scmp.eq.s32.totalorder %s17, 0
    %p184 = por %p182, %p183
    %p185 = scmp.ne.s32.totalorder %s177, %s179
    %p186 = scmp.eq.s32.totalorder %s22, 1
    %p187 = por %p185, %p186
    %p188 = scmp.ne.s32.totalorder %s179, %s180
    %p189 = scmp.eq.s32.totalorder %s22, 0
    %p190 = por %p188, %p189
    %p191 = scmp.ne.s32.totalorder %s179, %s180
    %p192 = scmp.eq.s32.totalorder %s23, 1
    %p193 = por %p191, %p192
    %p195 = scmp.ne.s32.totalorder %s180, %s194
    %p196 = scmp.eq.s32.totalorder %s23, 0
    %p197 = por %p195, %p196
    %s199 = sadd.s32 %s198, 1
    %p202 = scmp.eq.s32.totalorder %s17, 1
    %p203 = scmp.ne.s32.totalorder %s198, %s200
    %p204 = scmp.eq.s32.totalorder %s17, 0
    %p205 = por %p203, %p204
    %p206 = scmp.ne.s32.totalorder %s198, %s200
    %p207 = scmp.eq.s32.totalorder %s22, 1
    %p208 = por %p206, %p207
    %p209 = scmp.ne.s32.totalorder %s200, %s201
    %p210 = scmp.eq.s32.totalorder %s22, 0
    %p211 = por %p209, %p210
    %p212 = scmp.ne.s32.totalorder %s200, %s201
    %p213 = scmp.eq.s32.totalorder %s23, 1
    %p214 = por %p212, %p213
    %p216 = scmp.ne.s32.totalorder %s201, %s215
    %p217 = scmp.eq.s32.totalorder %s23, 0
    %p218 = por %p216, %p217
    %s220 = sadd.s32 %s219, 1
    %p223 = scmp.eq.s32.totalorder %s17, 1
    %p224 = scmp.ne.s32.totalorder %s219, %s221
    %p225 = scmp.eq.s32.totalorder %s17, 0
    %p226 = por %p224, %p225
    %p227 = scmp.ne.s32.totalorder %s219, %s221
    %p228 = scmp.eq.s32.totalorder %s22, 1
    %p229 = por %p227, %p228
    %p230 = scmp.ne.s32.totalorder %s221, %s222
    %p231 = scmp.eq.s32.totalorder %s22, 0
    %p232 = por %p230, %p231
    %p233 = scmp.ne.s32.totalorder %s221, %s222
    %p234 = scmp.eq.s32.totalorder %s23, 1
    %p235 = por %p233, %p234
    %p237 = scmp.ne.s32.totalorder %s222, %s236
    %p238 = scmp.eq.s32.totalorder %s23, 0
    %p239 = por %p237, %p238
    %s241 = sadd.s32 %s240, 1
    %p244 = scmp.eq.s32.totalorder %s17, 1
    %p245 = scmp.ne.s32.totalorder %s240, %s242
    %p246 = scmp.eq.s32.totalorder %s17, 0
    %p247 = por %p245, %p246
    %p248 = scmp.ne.s32.totalorder %s240, %s242
    %p249 = scmp.eq.s32.totalorder %s22, 1
    %p250 = por %p248, %p249
    %p251 = scmp.ne.s32.totalorder %s242, %s243
    %p252 = scmp.eq.s32.totalorder %s22, 0
    %p253 = por %p251, %p252
    %p254 = scmp.ne.s32.totalorder %s242, %s243
    %p255 = scmp.eq.s32.totalorder %s23, 1
    %p256 = por %p254, %p255
    %p258 = scmp.ne.s32.totalorder %s243, %s257
    %p259 = scmp.eq.s32.totalorder %s23, 0
    %p260 = por %p258, %p259
    %s261 = ssub.s32 %s17, %s24
    %p262 = scmp.eq.s32.totalorder %s261, 0
    %s264 = sadd.s32 %s263, 1
    %s265 = scalar_select %p262, %s263, %s264
    %p268 = pneg %p262
    %p269 = scmp.eq.s32.totalorder %s17, 1
    %p270 = por %p268, %p269
    %p271 = scmp.ne.s32.totalorder %s263, %s266
    %p272 = scmp.eq.s32.totalorder %s17, 0
    %p273 = por %p271, %p272
    %p274 = scmp.ne.s32.totalorder %s263, %s266
    %p275 = scmp.eq.s32.totalorder %s22, 1
    %p276 = por %p274, %p275
    %p277 = scmp.ne.s32.totalorder %s266, %s267
    %p278 = scmp.eq.s32.totalorder %s22, 0
    %p279 = por %p277, %p278
    %p280 = scmp.ne.s32.totalorder %s266, %s267
    %p281 = scmp.eq.s32.totalorder %s23, 1
    %p282 = por %p280, %p281
    %p284 = scmp.ne.s32.totalorder %s267, %s283
    %p285 = scmp.eq.s32.totalorder %s23, 0
    %p286 = por %p284, %p285
    %p287 = scmp.le.s32.totalorder 1, %s17
    %p288 = scmp.lt.s32.totalorder %s17, 3
    %p289 = pnand %p287, %p288
    %p290 = pneg %p289
    // Predicated region
    $region9: #{coord_att_pallas.1} parent=5 // pred_check
      _
    $region10: #{coord_att_pallas.1} parent=5 // pred_check_branch
      %292 = sbr.rel (%p289) target = $region12
    $region11: #{coord_att_pallas.1} parent=5 // pred_region
      %s293 = ssub.s32 %s17, 1
      // Predicated region
      $region13: #{coord_att_pallas.1} parent=11 // pred_check
        %p294 = pneg %p64
      $region14: #{coord_att_pallas.1} parent=11 // pred_check_branch
        %296 = sbr.rel (%p294) target = $region16
      $region15: #{coord_att_pallas.1} parent=11 // pred_region
        _
      $region16: #{coord_att_pallas.1} parent=11 // pred_fallthru
        _
      // Predicated region
      $region17: #{coord_att_pallas.1} parent=11 // pred_check
        %p297 = pneg %p85
      $region18: #{coord_att_pallas.1} parent=11 // pred_check_branch
        %299 = sbr.rel (%p297) target = $region20
      $region19: #{coord_att_pallas.1} parent=11 // pred_region
        _
      $region20: #{coord_att_pallas.1} parent=11 // pred_fallthru
        _
      // Predicated region
      $region21: #{coord_att_pallas.1} parent=11 // pred_check
        %p300 = pneg %p106
      $region22: #{coord_att_pallas.1} parent=11 // pred_check_branch
        %302 = sbr.rel (%p300) target = $region24
      $region23: #{coord_att_pallas.1} parent=11 // pred_region
        _
      $region24: #{coord_att_pallas.1} parent=11 // pred_fallthru
        _
      // Predicated region
      $region25: #{coord_att_pallas.1} parent=11 // pred_check
        %p303 = pneg %p127
      $region26: #{coord_att_pallas.1} parent=11 // pred_check_branch
        %305 = sbr.rel (%p303) target = $region28
      $region27: #{coord_att_pallas.1} parent=11 // pred_region
        _
      $region28: #{coord_att_pallas.1} parent=11 // pred_fallthru
        _
      // Predicated region
      $region29: #{coord_att_pallas.1} parent=11 // pred_check
        %p306 = pneg %p148
      $region30: #{coord_att_pallas.1} parent=11 // pred_check_branch
        %308 = sbr.rel (%p306) target = $region32
      $region31: #{coord_att_pallas.1} parent=11 // pred_region
        _
      $region32: #{coord_att_pallas.1} parent=11 // pred_fallthru
        _
      // Predicated region
      $region33: #{coord_att_pallas.1} parent=11 // pred_check
        %p309 = pneg %p169
      $region34: #{coord_att_pallas.1} parent=11 // pred_check_branch
        %311 = sbr.rel (%p309) target = $region36
      $region35: #{coord_att_pallas.1} parent=11 // pred_region
        _
      $region36: #{coord_att_pallas.1} parent=11 // pred_fallthru
        _
      // Predicated region
      $region37: #{coord_att_pallas.1} parent=11 // pred_check
        %p312 = pneg %p190
      $region38: #{coord_att_pallas.1} parent=11 // pred_check_branch
        %314 = sbr.rel (%p312) target = $region40
      $region39: #{coord_att_pallas.1} parent=11 // pred_region
        _
      $region40: #{coord_att_pallas.1} parent=11 // pred_fallthru
        _
      // Predicated region
      $region41: #{coord_att_pallas.1} parent=11 // pred_check
        %p315 = pneg %p211
      $region42: #{coord_att_pallas.1} parent=11 // pred_check_branch
        %317 = sbr.rel (%p315) target = $region44
      $region43: #{coord_att_pallas.1} parent=11 // pred_region
        _
      $region44: #{coord_att_pallas.1} parent=11 // pred_fallthru
        _
      // Predicated region
      $region45: #{coord_att_pallas.1} parent=11 // pred_check
        %p318 = pneg %p232
      $region46: #{coord_att_pallas.1} parent=11 // pred_check_branch
        %320 = sbr.rel (%p318) target = $region48
      $region47: #{coord_att_pallas.1} parent=11 // pred_region
        _
      $region48: #{coord_att_pallas.1} parent=11 // pred_fallthru
        _
      // Predicated region
      $region49: #{coord_att_pallas.1} parent=11 // pred_check
        %p321 = pneg %p253
      $region50: #{coord_att_pallas.1} parent=11 // pred_check_branch
        %323 = sbr.rel (%p321) target = $region52
      $region51: #{coord_att_pallas.1} parent=11 // pred_region
        _
      $region52: #{coord_att_pallas.1} parent=11 // pred_fallthru
        _
    $region12: #{coord_att_pallas.1} parent=5 // pred_fallthru
      _
    %p324 = scmp.lt.s32.totalorder %s17, 2
    // Predicated region
    $region53: #{coord_att_pallas.1} parent=5 // pred_check
      %p325 = pneg %p324
    $region54: #{coord_att_pallas.1} parent=5 // pred_check_branch
      %327 = sbr.rel (%p325) target = $region56
    $region55: #{coord_att_pallas.1} parent=5 // pred_region
      // Predicated region
      $region57: #{coord_att_pallas.1} parent=55 // pred_check
        %p328 = pneg %p37
      $region58: #{coord_att_pallas.1} parent=55 // pred_check_branch
        %330 = sbr.rel (%p328) target = $region60
      $region59: #{coord_att_pallas.1} parent=55 // pred_region
        %s331 = smul.u32 4, %s17
        %p332 = scmp.lt.s32.totalorder %s331, 7
        %s333 = scalar_select %p332, %s331, 7
        %s334 = smul.addr %s333, 2
        %s335 = smul.addr %s334, 8
        %s336 = scalar_lea.vmem %s0, %s335
        %s337 = smul.u32 4, %s17
      $region60: #{coord_att_pallas.1} parent=55 // pred_fallthru
        _
    $region56: #{coord_att_pallas.1} parent=5 // pred_fallthru
      _
    %p338 = scmp.le.s32.totalorder 1, %s17
    %p339 = scmp.lt.s32.totalorder %s17, 3
    %p340 = pnand %p338, %p339
    %p341 = pneg %p340
    // Predicated region
    $region61: #{coord_att_pallas.1} parent=5 // pred_check
      _
    $region62: #{coord_att_pallas.1} parent=5 // pred_check_branch
      %343 = sbr.rel (%p340) target = $region64
    $region63: #{coord_att_pallas.1} parent=5 // pred_region
      %s344 = ssub.s32 %s17, 1
      %s345 = smul.u32 4, %s22
      %p346 = scmp.lt.s32.totalorder %s345, 7
      %s347 = scalar_select %p346, %s345, 7
      %s348 = smul.addr %s347, 2
      %s349 = smul.addr %s348, 8
      %s350 = scalar_lea.vmem %s0, %s349
      %p351 = pneg %p43
      %p352 = pneg %p40
      %p353 = pneg %p64
      %p354 = pneg %p61
      %p355 = pneg %p85
      %p356 = pneg %p82
      %p357 = pneg %p106
      %p358 = pneg %p103
      %p359 = pneg %p127
      %p360 = pneg %p124
      %p361 = pneg %p148
      %p362 = pneg %p145
      %p363 = pneg %p169
      %p364 = pneg %p166
      %p365 = pneg %p190
      %p366 = pneg %p187
      %p367 = pneg %p211
      %p368 = pneg %p208
      %p369 = pneg %p232
      %p370 = pneg %p229
      %p371 = pneg %p253
      %p372 = pneg %p250
      %p373 = pneg %p279
      %p374 = pneg %p276
      %s375 = smul.u32 4, %s22
      %p376 = scmp.lt.s32.totalorder %s375, 7
      %s377 = scalar_select %p376, %s375, 7
      %s378 = smul.addr %s377, 2
      %s379 = smul.addr %s378, 8
      %s380 = scalar_lea.vmem %s11, %s379
      %s381 = smul.u32 4, %s22
      %p382 = scmp.lt.s32.totalorder %s381, 7
      %s383 = scalar_select %p382, %s381, 7
      %s384 = smul.addr %s383, 2
      %s385 = smul.addr %s384, 8
      %s386 = scalar_lea.vmem %s0, %s385
      %s387 = smul.u32 4, %s22
      %s388 = smul.u32 4, %s22
      %p389 = scmp.lt.s32.totalorder %s388, 7
      %s390 = scalar_select %p389, %s388, 7
      %s391 = smul.addr %s390, 2
      %s392 = smul.addr %s391, 8
      %s393 = scalar_lea.vmem %s11, %s392
      %s394 = smul.u32 4, %s22
      %v395 = vld [vmem:[%s386] sm:$0xff]
      %v396 = vld [vmem:[%s386 + $0x8] sm:$0xff]
      %v397 = vld [vmem:[%s386 + $0x10] sm:$0xff]
      %v398 = vld [vmem:[%s386 + $0x18] sm:$0xff]
      %v399 = vld [vmem:[%s386 + $0x20] sm:$0xff]
      %v400 = vld [vmem:[%s386 + $0x28] sm:$0xff]
      %v401 = vld [vmem:[%s386 + $0x30] sm:$0xff]
      %v402 = vld [vmem:[%s386 + $0x38] sm:$0xff]
      %v403 = vld [vmem:[%s1] sm:$0xff]
      %v404 = vld [vmem:[%s1 + $0x8] sm:$0xff]
      %v405 = vld [vmem:[%s1 + $0x10] sm:$0xff]
      %v406 = vld [vmem:[%s1 + $0x18] sm:$0xff]
      %v407 = vld [vmem:[%s1 + $0x20] sm:$0xff]
      %v408 = vld [vmem:[%s1 + $0x28] sm:$0xff]
      %v409 = vld [vmem:[%s1 + $0x30] sm:$0xff]
      %v410 = vld [vmem:[%s1 + $0x38] sm:$0xff]
      %v411 = vld [vmem:[%s1 + $0x40] sm:$0xff]
      %v412 = vld [vmem:[%s1 + $0x48] sm:$0xff]
      %v413 = vld [vmem:[%s1 + $0x50] sm:$0xff]
      %v414 = vld [vmem:[%s1 + $0x58] sm:$0xff]
      %v415 = vld [vmem:[%s1 + $0x60] sm:$0xff]
      %v416 = vld [vmem:[%s1 + $0x68] sm:$0xff]
      %v417 = vld [vmem:[%s1 + $0x70] sm:$0xff]
      %v418 = vld [vmem:[%s1 + $0x78] sm:$0xff]
      %v419 = vld [vmem:[%s1 + $0x80] sm:$0xff]
      %v420 = vld [vmem:[%s1 + $0x88] sm:$0xff]
      %v421 = vld [vmem:[%s1 + $0x90] sm:$0xff]
      %v422 = vld [vmem:[%s1 + $0x98] sm:$0xff]
      %v423 = vld [vmem:[%s1 + $0xa0] sm:$0xff]
      %v424 = vld [vmem:[%s1 + $0xa8] sm:$0xff]
      %v425 = vld [vmem:[%s1 + $0xb0] sm:$0xff]
      %v426 = vld [vmem:[%s1 + $0xb8] sm:$0xff]
      %v427 = vld [vmem:[%s1 + $0xc0] sm:$0xff]
      %v428 = vld [vmem:[%s1 + $0xc8] sm:$0xff]
      %v429 = vld [vmem:[%s1 + $0xd0] sm:$0xff]
      %v430 = vld [vmem:[%s1 + $0xd8] sm:$0xff]
      %v431 = vld [vmem:[%s1 + $0xe0] sm:$0xff]
      %v432 = vld [vmem:[%s1 + $0xe8] sm:$0xff]
      %v433 = vld [vmem:[%s1 + $0xf0] sm:$0xff]
      %v434 = vld [vmem:[%s1 + $0xf8] sm:$0xff]
      %435 = vmatpush.msra.mxu0 %v418
      %436 = vmatpush.msra.mxu0 %v417
      %437 = vmatpush.msra.mxu0 %v416
      %438 = vmatpush.msra.mxu0 %v415
      %439 = vmatpush.msra.mxu0 %v414
      %440 = vmatpush.msra.mxu0 %v413
      %441 = vmatpush.msra.mxu0 %v412
      %442 = vmatpush.msra.mxu0 %v411
      %443 = vmatpush.msra.mxu0 %v410
      %444 = vmatpush.msra.mxu0 %v409
      %445 = vmatpush.msra.mxu0 %v408
      %446 = vmatpush.msra.mxu0 %v407
      %447 = vmatpush.msra.mxu0 %v406
      %448 = vmatpush.msra.mxu0 %v405
      %449 = vmatpush.msra.mxu0 %v404
      %450 = vmatpush.msra.mxu0 %v403
      %451 = vmatmul.f32.gmra.mxu0 %v395
      %v452 = vpop.f32.mrf.mxu0
      %v453 = vadd.f32 0.0, %v452
      %454 = vmatmul.f32.gmra.mxu0 %v397
      %v455 = vpop.f32.mrf.mxu0
      %v456 = vadd.f32 0.0, %v455
      %457 = vmatmul.f32.gmra.mxu0 %v399
      %v458 = vpop.f32.mrf.mxu0
      %v459 = vadd.f32 0.0, %v458
      %460 = vmatmul.f32.gmra.mxu0 %v401
      %v461 = vpop.f32.mrf.mxu0
      %v462 = vadd.f32 0.0, %v461
      %463 = vdwg.mxu0
      %464 = vmatpush.msra.mxu0 %v434
      %465 = vmatpush.msra.mxu0 %v433
      %466 = vmatpush.msra.mxu0 %v432
      %467 = vmatpush.msra.mxu0 %v431
      %468 = vmatpush.msra.mxu0 %v430
      %469 = vmatpush.msra.mxu0 %v429
      %470 = vmatpush.msra.mxu0 %v428
      %471 = vmatpush.msra.mxu0 %v427
      %472 = vmatpush.msra.mxu0 %v426
      %473 = vmatpush.msra.mxu0 %v425
      %474 = vmatpush.msra.mxu0 %v424
      %475 = vmatpush.msra.mxu0 %v423
      %476 = vmatpush.msra.mxu0 %v422
      %477 = vmatpush.msra.mxu0 %v421
      %478 = vmatpush.msra.mxu0 %v420
      %479 = vmatpush.msra.mxu0 %v419
      %480 = vmatmul.f32.gmra.mxu0 %v396
      %v481 = vpop.f32.mrf.mxu0
      %v482 = vadd.f32 %v453, %v481
      %483 = vmatmul.f32.gmra.mxu0 %v398
      %v484 = vpop.f32.mrf.mxu0
      %v485 = vadd.f32 %v456, %v484
      %486 = vmatmul.f32.gmra.mxu0 %v400
      %v487 = vpop.f32.mrf.mxu0
      %v488 = vadd.f32 %v459, %v487
      %489 = vmatmul.f32.gmra.mxu0 %v402
      %v490 = vpop.f32.mrf.mxu0
      %v491 = vadd.f32 %v462, %v490
      %492 = vdwg.mxu0
      %v493 = vld [vmem:[%s2] sm:$0xff]
      %v494 = vld [vmem:[%s2 + $0x8] sm:$0xff]
      %v495 = vld [vmem:[%s2 + $0x10] sm:$0xff]
      %v496 = vld [vmem:[%s2 + $0x18] sm:$0xff]
      %v497 = vld [vmem:[%s2 + $0x20] sm:$0xff]
      %v498 = vld [vmem:[%s2 + $0x28] sm:$0xff]
      %v499 = vld [vmem:[%s2 + $0x30] sm:$0xff]
      %v500 = vld [vmem:[%s2 + $0x38] sm:$0xff]
      %v501 = vld [vmem:[%s2 + $0x40] sm:$0xff]
      %v502 = vld [vmem:[%s2 + $0x48] sm:$0xff]
      %v503 = vld [vmem:[%s2 + $0x50] sm:$0xff]
      %v504 = vld [vmem:[%s2 + $0x58] sm:$0xff]
      %v505 = vld [vmem:[%s2 + $0x60] sm:$0xff]
      %v506 = vld [vmem:[%s2 + $0x68] sm:$0xff]
      %v507 = vld [vmem:[%s2 + $0x70] sm:$0xff]
      %v508 = vld [vmem:[%s2 + $0x78] sm:$0xff]
      %v509 = vld [vmem:[%s2 + $0x80] sm:$0xff]
      %v510 = vld [vmem:[%s2 + $0x88] sm:$0xff]
      %v511 = vld [vmem:[%s2 + $0x90] sm:$0xff]
      %v512 = vld [vmem:[%s2 + $0x98] sm:$0xff]
      %v513 = vld [vmem:[%s2 + $0xa0] sm:$0xff]
      %v514 = vld [vmem:[%s2 + $0xa8] sm:$0xff]
      %v515 = vld [vmem:[%s2 + $0xb0] sm:$0xff]
      %v516 = vld [vmem:[%s2 + $0xb8] sm:$0xff]
      %v517 = vld [vmem:[%s2 + $0xc0] sm:$0xff]
      %v518 = vld [vmem:[%s2 + $0xc8] sm:$0xff]
      %v519 = vld [vmem:[%s2 + $0xd0] sm:$0xff]
      %v520 = vld [vmem:[%s2 + $0xd8] sm:$0xff]
      %v521 = vld [vmem:[%s2 + $0xe0] sm:$0xff]
      %v522 = vld [vmem:[%s2 + $0xe8] sm:$0xff]
      %v523 = vld [vmem:[%s2 + $0xf0] sm:$0xff]
      %v524 = vld [vmem:[%s2 + $0xf8] sm:$0xff]
      %525 = vmatpush.msra.mxu0 %v508
      %526 = vmatpush.msra.mxu0 %v507
      %527 = vmatpush.msra.mxu0 %v506
      %528 = vmatpush.msra.mxu0 %v505
      %529 = vmatpush.msra.mxu0 %v504
      %530 = vmatpush.msra.mxu0 %v503
      %531 = vmatpush.msra.mxu0 %v502
      %532 = vmatpush.msra.mxu0 %v501
      %533 = vmatpush.msra.mxu0 %v500
      %534 = vmatpush.msra.mxu0 %v499
      %535 = vmatpush.msra.mxu0 %v498
      %536 = vmatpush.msra.mxu0 %v497
      %537 = vmatpush.msra.mxu0 %v496
      %538 = vmatpush.msra.mxu0 %v495
      %539 = vmatpush.msra.mxu0 %v494
      %540 = vmatpush.msra.mxu0 %v493
      %541 = vmatmul.f32.gmra.mxu0 %v395
      %v542 = vpop.f32.mrf.mxu0
      %v543 = vadd.f32 0.0, %v542
      %544 = vmatmul.f32.gmra.mxu0 %v397
      %v545 = vpop.f32.mrf.mxu0
      %v546 = vadd.f32 0.0, %v545
      %547 = vmatmul.f32.gmra.mxu0 %v399
      %v548 = vpop.f32.mrf.mxu0
      %v549 = vadd.f32 0.0, %v548
      %550 = vmatmul.f32.gmra.mxu0 %v401
      %v551 = vpop.f32.mrf.mxu0
      %v552 = vadd.f32 0.0, %v551
      %553 = vdwg.mxu0
      %554 = vmatpush.msra.mxu0 %v524
      %555 = vmatpush.msra.mxu0 %v523
      %556 = vmatpush.msra.mxu0 %v522
      %557 = vmatpush.msra.mxu0 %v521
      %558 = vmatpush.msra.mxu0 %v520
      %559 = vmatpush.msra.mxu0 %v519
      %560 = vmatpush.msra.mxu0 %v518
      %561 = vmatpush.msra.mxu0 %v517
      %562 = vmatpush.msra.mxu0 %v516
      %563 = vmatpush.msra.mxu0 %v515
      %564 = vmatpush.msra.mxu0 %v514
      %565 = vmatpush.msra.mxu0 %v513
      %566 = vmatpush.msra.mxu0 %v512
      %567 = vmatpush.msra.mxu0 %v511
      %568 = vmatpush.msra.mxu0 %v510
      %569 = vmatpush.msra.mxu0 %v509
      %570 = vmatmul.f32.gmra.mxu0 %v396
      %v571 = vpop.f32.mrf.mxu0
      %v572 = vadd.f32 %v543, %v571
      %573 = vmatmul.f32.gmra.mxu0 %v398
      %v574 = vpop.f32.mrf.mxu0
      %v575 = vadd.f32 %v546, %v574
      %576 = vmatmul.f32.gmra.mxu0 %v400
      %v577 = vpop.f32.mrf.mxu0
      %v578 = vadd.f32 %v549, %v577
      %579 = vmatmul.f32.gmra.mxu0 %v402
      %v580 = vpop.f32.mrf.mxu0
      %v581 = vadd.f32 %v552, %v580
      %582 = vdwg.mxu0
      %v583 = vld [vmem:[%s5] sm:$0x3]
      %v584 = vld [vmem:[%s6] sm:$0x3]
      %586 = vset.pattern.permute.xlu0 0
      %587 = vperm.xlu0 %586, %v584
      %v588 = vpop.permute.xlu0 %587
      %vm590 = vcmask 261120
      %v592 = vsel %vm590, %v583, 0
      %594 = vmatpush.msra.mxu0 0.0
      %595 = vmatpush.msra.mxu0 0.0
      %596 = vmatpush.msra.mxu0 0.0
      %597 = vmatpush.msra.mxu0 0.0
      %598 = vmatpush.msra.mxu0 0.0
      %599 = vmatpush.msra.mxu0 0.0
      %600 = vmatpush.msra.mxu0 0.0
      %601 = vmatpush.msra.mxu0 0.0
      %602 = vmatpush.msra.mxu0 0.0
      %603 = vmatpush.msra.mxu0 0.0
      %604 = vmatpush.msra.mxu0 0.0
      %605 = vmatpush.msra.mxu0 0.0
      %606 = vmatpush.msra.mxu0 %v491
      %607 = vmatpush.msra.mxu0 %v488
      %608 = vmatpush.msra.mxu0 %v485
      %609 = vmatpush.msra.mxu0 %v482
      %610 = vmatmul.f32.gmra.mxu0 %v592
      %v611 = vpop.f32.mrf.mxu0
      %v612 = vadd.f32 %v588, %v611
      %613 = vdwg.mxu0
      %v614 = vmax.f32 %v612, 0.0
      %615 = vmatpush.msra.mxu0 0.0
      %616 = vmatpush.msra.mxu0 0.0
      %617 = vmatpush.msra.mxu0 0.0
      %618 = vmatpush.msra.mxu0 0.0
      %619 = vmatpush.msra.mxu0 0.0
      %620 = vmatpush.msra.mxu0 0.0
      %621 = vmatpush.msra.mxu0 0.0
      %622 = vmatpush.msra.mxu0 0.0
      %623 = vmatpush.msra.mxu0 0.0
      %624 = vmatpush.msra.mxu0 0.0
      %625 = vmatpush.msra.mxu0 0.0
      %626 = vmatpush.msra.mxu0 0.0
      %627 = vmatpush.msra.mxu0 %v581
      %628 = vmatpush.msra.mxu0 %v578
      %629 = vmatpush.msra.mxu0 %v575
      %630 = vmatpush.msra.mxu0 %v572
      %631 = vmatmul.f32.gmra.mxu0 %v592
      %v632 = vpop.f32.mrf.mxu0
      %v633 = vadd.f32 %v588, %v632
      %634 = vdwg.mxu0
      %v635 = vmax.f32 %v633, 0.0
      %v636 = vld [vmem:[%s7] sm:$0xff]
      %v637 = vld [vmem:[%s7 + $0x8] sm:$0xff]
      %v638 = vld [vmem:[%s7 + $0x10] sm:$0xff]
      %v639 = vld [vmem:[%s7 + $0x18] sm:$0xff]
      %v640 = vld [vmem:[%s8] sm:$0xff]
      %v641 = vld [vmem:[%s8 + $0x8] sm:$0xff]
      %v642 = vld [vmem:[%s8 + $0x10] sm:$0xff]
      %v643 = vld [vmem:[%s8 + $0x18] sm:$0xff]
      %645 = vset.pattern.permute.xlu0 0
      %646 = vperm.xlu0 %645, %v640
      %v647 = vpop.permute.xlu0 %646
      %650 = vset.pattern.permute.xlu0 0
      %651 = vperm.xlu0 %650, %v641
      %v652 = vpop.permute.xlu0 %651
      %655 = vset.pattern.permute.xlu0 0
      %656 = vperm.xlu0 %655, %v642
      %v657 = vpop.permute.xlu0 %656
      %660 = vset.pattern.permute.xlu0 0
      %661 = vperm.xlu0 %660, %v643
      %v662 = vpop.permute.xlu0 %661
      %vm664 = vcmask 15360
      %v666 = vsel %vm664, %v636, 0
      %v669 = vsel %vm664, %v637, 0
      %v672 = vsel %vm664, %v638, 0
      %v675 = vsel %vm664, %v639, 0
      %vm677 = vcmask 1041408
      %v679 = vsel %vm677, %v614, 0
      %681 = vmatpush.msra.mxu0 0.0
      %682 = vmatpush.msra.mxu0 0.0
      %683 = vmatpush.msra.mxu0 0.0
      %684 = vmatpush.msra.mxu0 0.0
      %685 = vmatpush.msra.mxu0 0.0
      %686 = vmatpush.msra.mxu0 0.0
      %687 = vmatpush.msra.mxu0 0.0
      %688 = vmatpush.msra.mxu0 0.0
      %689 = vmatpush.msra.mxu0 0.0
      %690 = vmatpush.msra.mxu0 0.0
      %691 = vmatpush.msra.mxu0 0.0
      %692 = vmatpush.msra.mxu0 0.0
      %693 = vmatpush.msra.mxu0 0.0
      %694 = vmatpush.msra.mxu0 0.0
      %695 = vmatpush.msra.mxu0 0.0
      %696 = vmatpush.msra.mxu0 %v679
      %697 = vmatmul.f32.gmra.mxu0 %v666
      %v698 = vpop.f32.mrf.mxu0
      %v699 = vadd.f32 %v647, %v698
      %700 = vmatmul.f32.gmra.mxu0 %v669
      %v701 = vpop.f32.mrf.mxu0
      %v702 = vadd.f32 %v652, %v701
      %703 = vmatmul.f32.gmra.mxu0 %v672
      %v704 = vpop.f32.mrf.mxu0
      %v705 = vadd.f32 %v657, %v704
      %706 = vmatmul.f32.gmra.mxu0 %v675
      %v707 = vpop.f32.mrf.mxu0
      %v708 = vadd.f32 %v662, %v707
      %709 = vdwg.mxu0
      %v710 = vxor.u32 %v699, 2147483648
      %v711 = vxor.u32 %v702, 2147483648
      %v712 = vxor.u32 %v705, 2147483648
      %v713 = vxor.u32 %v708, 2147483648
      %v714 = vmul.f32 %v710, 1.442695
      %v715 = vpow.pop %v714
      %v716 = vmul.f32 %v711, 1.442695
      %v717 = vpow.pop %v716
      %v718 = vmul.f32 %v712, 1.442695
      %v719 = vpow.pop %v718
      %v720 = vmul.f32 %v713, 1.442695
      %v721 = vpow.pop %v720
      %v722 = vadd.f32 %v715, 1.0
      %v723 = vadd.f32 %v717, 1.0
      %v724 = vadd.f32 %v719, 1.0
      %v725 = vadd.f32 %v721, 1.0
      %v726 = vrcp.pop %v722
      %v727 = vmul.f32 %v722, %v726
      %v728 = vsub.f32 1.0, %v727
      %v729 = vmul.f32 %v726, %v728
      %v730 = vadd.f32 %v726, %v729
      %vm731 = vweird.f32 %v722
      %vm732 = vweird.f32 %v726
      %vm733 = vmor %vm731, %vm732
      %v734 = vsel %vm733, %v726, %v730
      %v735 = vand.u32 2147483647, %v722
      %vm736 = vcmp.eq.f32.partialorder %v735, 8.507059e+37
      %v737 = vand.u32 %v722, 2147483648
      %v738 = vor.u32 1.1754944e-38, %v737
      %v739 = vsel %vm736, %v738, %v734
      %v740 = vmul.f32 1.0, %v739
      %v741 = vrcp.pop %v723
      %v742 = vmul.f32 %v723, %v741
      %v743 = vsub.f32 1.0, %v742
      %v744 = vmul.f32 %v741, %v743
      %v745 = vadd.f32 %v741, %v744
      %vm746 = vweird.f32 %v723
      %vm747 = vweird.f32 %v741
      %vm748 = vmor %vm746, %vm747
      %v749 = vsel %vm748, %v741, %v745
      %v750 = vand.u32 2147483647, %v723
      %vm751 = vcmp.eq.f32.partialorder %v750, 8.507059e+37
      %v752 = vand.u32 %v723, 2147483648
      %v753 = vor.u32 1.1754944e-38, %v752
      %v754 = vsel %vm751, %v753, %v749
      %v755 = vmul.f32 1.0, %v754
      %v756 = vrcp.pop %v724
      %v757 = vmul.f32 %v724, %v756
      %v758 = vsub.f32 1.0, %v757
      %v759 = vmul.f32 %v756, %v758
      %v760 = vadd.f32 %v756, %v759
      %vm761 = vweird.f32 %v724
      %vm762 = vweird.f32 %v756
      %vm763 = vmor %vm761, %vm762
      %v764 = vsel %vm763, %v756, %v760
      %v765 = vand.u32 2147483647, %v724
      %vm766 = vcmp.eq.f32.partialorder %v765, 8.507059e+37
      %v767 = vand.u32 %v724, 2147483648
      %v768 = vor.u32 1.1754944e-38, %v767
      %v769 = vsel %vm766, %v768, %v764
      %v770 = vmul.f32 1.0, %v769
      %v771 = vrcp.pop %v725
      %v772 = vmul.f32 %v725, %v771
      %v773 = vsub.f32 1.0, %v772
      %v774 = vmul.f32 %v771, %v773
      %v775 = vadd.f32 %v771, %v774
      %vm776 = vweird.f32 %v725
      %vm777 = vweird.f32 %v771
      %vm778 = vmor %vm776, %vm777
      %v779 = vsel %vm778, %v771, %v775
      %v780 = vand.u32 2147483647, %v725
      %vm781 = vcmp.eq.f32.partialorder %v780, 8.507059e+37
      %v782 = vand.u32 %v725, 2147483648
      %v783 = vor.u32 1.1754944e-38, %v782
      %v784 = vsel %vm781, %v783, %v779
      %v785 = vmul.f32 1.0, %v784
      %v786 = vld [vmem:[%s9] sm:$0xff]
      %v787 = vld [vmem:[%s9 + $0x8] sm:$0xff]
      %v788 = vld [vmem:[%s9 + $0x10] sm:$0xff]
      %v789 = vld [vmem:[%s9 + $0x18] sm:$0xff]
      %v790 = vld [vmem:[%s10] sm:$0xff]
      %v791 = vld [vmem:[%s10 + $0x8] sm:$0xff]
      %v792 = vld [vmem:[%s10 + $0x10] sm:$0xff]
      %v793 = vld [vmem:[%s10 + $0x18] sm:$0xff]
      %795 = vset.pattern.permute.xlu0 0
      %796 = vperm.xlu0 %795, %v790
      %v797 = vpop.permute.xlu0 %796
      %800 = vset.pattern.permute.xlu0 0
      %801 = vperm.xlu0 %800, %v791
      %v802 = vpop.permute.xlu0 %801
      %805 = vset.pattern.permute.xlu0 0
      %806 = vperm.xlu0 %805, %v792
      %v807 = vpop.permute.xlu0 %806
      %810 = vset.pattern.permute.xlu0 0
      %811 = vperm.xlu0 %810, %v793
      %v812 = vpop.permute.xlu0 %811
      %v815 = vsel %vm664, %v786, 0
      %v818 = vsel %vm664, %v787, 0
      %v821 = vsel %vm664, %v788, 0
      %v824 = vsel %vm664, %v789, 0
      %v827 = vsel %vm677, %v635, 0
      %829 = vmatpush.msra.mxu0 0.0
      %830 = vmatpush.msra.mxu0 0.0
      %831 = vmatpush.msra.mxu0 0.0
      %832 = vmatpush.msra.mxu0 0.0
      %833 = vmatpush.msra.mxu0 0.0
      %834 = vmatpush.msra.mxu0 0.0
      %835 = vmatpush.msra.mxu0 0.0
      %836 = vmatpush.msra.mxu0 0.0
      %837 = vmatpush.msra.mxu0 0.0
      %838 = vmatpush.msra.mxu0 0.0
      %839 = vmatpush.msra.mxu0 0.0
      %840 = vmatpush.msra.mxu0 0.0
      %841 = vmatpush.msra.mxu0 0.0
      %842 = vmatpush.msra.mxu0 0.0
      %843 = vmatpush.msra.mxu0 0.0
      %844 = vmatpush.msra.mxu0 %v827
      %845 = vmatmul.f32.gmra.mxu0 %v815
      %v846 = vpop.f32.mrf.mxu0
      %v847 = vadd.f32 %v797, %v846
      %848 = vmatmul.f32.gmra.mxu0 %v818
      %v849 = vpop.f32.mrf.mxu0
      %v850 = vadd.f32 %v802, %v849
      %851 = vmatmul.f32.gmra.mxu0 %v821
      %v852 = vpop.f32.mrf.mxu0
      %v853 = vadd.f32 %v807, %v852
      %854 = vmatmul.f32.gmra.mxu0 %v824
      %v855 = vpop.f32.mrf.mxu0
      %v856 = vadd.f32 %v812, %v855
      %857 = vdwg.mxu0
      %v858 = vxor.u32 %v847, 2147483648
      %v859 = vxor.u32 %v850, 2147483648
      %v860 = vxor.u32 %v853, 2147483648
      %v861 = vxor.u32 %v856, 2147483648
      %v862 = vmul.f32 %v858, 1.442695
      %v863 = vpow.pop %v862
      %v864 = vmul.f32 %v859, 1.442695
      %v865 = vpow.pop %v864
      %v866 = vmul.f32 %v860, 1.442695
      %v867 = vpow.pop %v866
      %v868 = vmul.f32 %v861, 1.442695
      %v869 = vpow.pop %v868
      %v870 = vadd.f32 %v863, 1.0
      %v871 = vadd.f32 %v865, 1.0
      %v872 = vadd.f32 %v867, 1.0
      %v873 = vadd.f32 %v869, 1.0
      %v874 = vrcp.pop %v870
      %v875 = vmul.f32 %v870, %v874
      %v876 = vsub.f32 1.0, %v875
      %v877 = vmul.f32 %v874, %v876
      %v878 = vadd.f32 %v874, %v877
      %vm879 = vweird.f32 %v870
      %vm880 = vweird.f32 %v874
      %vm881 = vmor %vm879, %vm880
      %v882 = vsel %vm881, %v874, %v878
      %v883 = vand.u32 2147483647, %v870
      %vm884 = vcmp.eq.f32.partialorder %v883, 8.507059e+37
      %v885 = vand.u32 %v870, 2147483648
      %v886 = vor.u32 1.1754944e-38, %v885
      %v887 = vsel %vm884, %v886, %v882
      %v888 = vmul.f32 1.0, %v887
      %v889 = vrcp.pop %v871
      %v890 = vmul.f32 %v871, %v889
      %v891 = vsub.f32 1.0, %v890
      %v892 = vmul.f32 %v889, %v891
      %v893 = vadd.f32 %v889, %v892
      %vm894 = vweird.f32 %v871
      %vm895 = vweird.f32 %v889
      %vm896 = vmor %vm894, %vm895
      %v897 = vsel %vm896, %v889, %v893
      %v898 = vand.u32 2147483647, %v871
      %vm899 = vcmp.eq.f32.partialorder %v898, 8.507059e+37
      %v900 = vand.u32 %v871, 2147483648
      %v901 = vor.u32 1.1754944e-38, %v900
      %v902 = vsel %vm899, %v901, %v897
      %v903 = vmul.f32 1.0, %v902
      %v904 = vrcp.pop %v872
      %v905 = vmul.f32 %v872, %v904
      %v906 = vsub.f32 1.0, %v905
      %v907 = vmul.f32 %v904, %v906
      %v908 = vadd.f32 %v904, %v907
      %vm909 = vweird.f32 %v872
      %vm910 = vweird.f32 %v904
      %vm911 = vmor %vm909, %vm910
      %v912 = vsel %vm911, %v904, %v908
      %v913 = vand.u32 2147483647, %v872
      %vm914 = vcmp.eq.f32.partialorder %v913, 8.507059e+37
      %v915 = vand.u32 %v872, 2147483648
      %v916 = vor.u32 1.1754944e-38, %v915
      %v917 = vsel %vm914, %v916, %v912
      %v918 = vmul.f32 1.0, %v917
      %v919 = vrcp.pop %v873
      %v920 = vmul.f32 %v873, %v919
      %v921 = vsub.f32 1.0, %v920
      %v922 = vmul.f32 %v919, %v921
      %v923 = vadd.f32 %v919, %v922
      %vm924 = vweird.f32 %v873
      %vm925 = vweird.f32 %v919
      %vm926 = vmor %vm924, %vm925
      %v927 = vsel %vm926, %v919, %v923
      %v928 = vand.u32 2147483647, %v873
      %vm929 = vcmp.eq.f32.partialorder %v928, 8.507059e+37
      %v930 = vand.u32 %v873, 2147483648
      %v931 = vor.u32 1.1754944e-38, %v930
      %v932 = vsel %vm929, %v931, %v927
      %v933 = vmul.f32 1.0, %v932
      %v934 = vld [vmem:[%s3] sm:$0xff]
      %v935 = vld [vmem:[%s3 + $0x8] sm:$0xff]
      %v936 = vld [vmem:[%s3 + $0x10] sm:$0xff]
      %v937 = vld [vmem:[%s3 + $0x18] sm:$0xff]
      %vm938 = vcmask 130048
      %v940 = vsel %vm938, %v740, 0
      %v943 = vsel %vm938, %v755, 0
      %v946 = vsel %vm938, %v770, 0
      %v949 = vsel %vm938, %v785, 0
      %951 = vmatpush.msra.mxu0 0.0
      %952 = vmatpush.msra.mxu0 0.0
      %953 = vmatpush.msra.mxu0 0.0
      %954 = vmatpush.msra.mxu0 0.0
      %955 = vmatpush.msra.mxu0 0.0
      %956 = vmatpush.msra.mxu0 0.0
      %957 = vmatpush.msra.mxu0 0.0
      %958 = vmatpush.msra.mxu0 0.0
      %959 = vmatpush.msra.mxu0 0.0
      %960 = vmatpush.msra.mxu0 0.0
      %961 = vmatpush.msra.mxu0 0.0
      %962 = vmatpush.msra.mxu0 0.0
      %963 = vmatpush.msra.mxu0 0.0
      %964 = vmatpush.msra.mxu0 0.0
      %965 = vmatpush.msra.mxu0 %v936
      %966 = vmatpush.msra.mxu0 %v934
      %967 = vmatmul.f32.gmra.mxu0 %v940
      %v968 = vpop.f32.mrf.mxu0
      %v969 = vadd.f32 0.0, %v968
      %970 = vmatmul.f32.gmra.mxu0 %v943
      %v971 = vpop.f32.mrf.mxu0
      %v972 = vadd.f32 0.0, %v971
      %973 = vmatmul.f32.gmra.mxu0 %v946
      %v974 = vpop.f32.mrf.mxu0
      %v975 = vadd.f32 0.0, %v974
      %976 = vmatmul.f32.gmra.mxu0 %v949
      %v977 = vpop.f32.mrf.mxu0
      %v978 = vadd.f32 0.0, %v977
      %979 = vdwg.mxu0
      %980 = vmatpush.msra.mxu0 0.0
      %981 = vmatpush.msra.mxu0 0.0
      %982 = vmatpush.msra.mxu0 0.0
      %983 = vmatpush.msra.mxu0 0.0
      %984 = vmatpush.msra.mxu0 0.0
      %985 = vmatpush.msra.mxu0 0.0
      %986 = vmatpush.msra.mxu0 0.0
      %987 = vmatpush.msra.mxu0 0.0
      %988 = vmatpush.msra.mxu0 0.0
      %989 = vmatpush.msra.mxu0 0.0
      %990 = vmatpush.msra.mxu0 0.0
      %991 = vmatpush.msra.mxu0 0.0
      %992 = vmatpush.msra.mxu0 0.0
      %993 = vmatpush.msra.mxu0 0.0
      %994 = vmatpush.msra.mxu0 %v937
      %995 = vmatpush.msra.mxu0 %v935
      %996 = vmatmul.f32.gmra.mxu0 %v940
      %v997 = vpop.f32.mrf.mxu0
      %v998 = vadd.f32 0.0, %v997
      %999 = vmatmul.f32.gmra.mxu0 %v943
      %v1000 = vpop.f32.mrf.mxu0
      %v1001 = vadd.f32 0.0, %v1000
      %1002 = vmatmul.f32.gmra.mxu0 %v946
      %v1003 = vpop.f32.mrf.mxu0
      %v1004 = vadd.f32 0.0, %v1003
      %1005 = vmatmul.f32.gmra.mxu0 %v949
      %v1006 = vpop.f32.mrf.mxu0
      %v1007 = vadd.f32 0.0, %v1006
      %1008 = vdwg.mxu0
      %v1009 = vld [vmem:[%s4] sm:$0xff]
      %v1010 = vld [vmem:[%s4 + $0x8] sm:$0xff]
      %v1011 = vld [vmem:[%s4 + $0x10] sm:$0xff]
      %v1012 = vld [vmem:[%s4 + $0x18] sm:$0xff]
      %v1014 = vsel %vm938, %v888, 0
      %v1017 = vsel %vm938, %v903, 0
      %v1020 = vsel %vm938, %v918, 0
      %v1023 = vsel %vm938, %v933, 0
      %1025 = vmatpush.msra.mxu0 0.0
      %1026 = vmatpush.msra.mxu0 0.0
      %1027 = vmatpush.msra.mxu0 0.0
      %1028 = vmatpush.msra.mxu0 0.0
      %1029 = vmatpush.msra.mxu0 0.0
      %1030 = vmatpush.msra.mxu0 0.0
      %1031 = vmatpush.msra.mxu0 0.0
      %1032 = vmatpush.msra.mxu0 0.0
      %1033 = vmatpush.msra.mxu0 0.0
      %1034 = vmatpush.msra.mxu0 0.0
      %1035 = vmatpush.msra.mxu0 0.0
      %1036 = vmatpush.msra.mxu0 0.0
      %1037 = vmatpush.msra.mxu0 0.0
      %1038 = vmatpush.msra.mxu0 0.0
      %1039 = vmatpush.msra.mxu0 %v1011
      %1040 = vmatpush.msra.mxu0 %v1009
      %1041 = vmatmul.f32.gmra.mxu0 %v1014
      %v1042 = vpop.f32.mrf.mxu0
      %v1043 = vadd.f32 0.0, %v1042
      %1044 = vmatmul.f32.gmra.mxu0 %v1017
      %v1045 = vpop.f32.mrf.mxu0
      %v1046 = vadd.f32 0.0, %v1045
      %1047 = vmatmul.f32.gmra.mxu0 %v1020
      %v1048 = vpop.f32.mrf.mxu0
      %v1049 = vadd.f32 0.0, %v1048
      %1050 = vmatmul.f32.gmra.mxu0 %v1023
      %v1051 = vpop.f32.mrf.mxu0
      %v1052 = vadd.f32 0.0, %v1051
      %1053 = vdwg.mxu0
      %1054 = vmatpush.msra.mxu0 0.0
      %1055 = vmatpush.msra.mxu0 0.0
      %1056 = vmatpush.msra.mxu0 0.0
      %1057 = vmatpush.msra.mxu0 0.0
      %1058 = vmatpush.msra.mxu0 0.0
      %1059 = vmatpush.msra.mxu0 0.0
      %1060 = vmatpush.msra.mxu0 0.0
      %1061 = vmatpush.msra.mxu0 0.0
      %1062 = vmatpush.msra.mxu0 0.0
      %1063 = vmatpush.msra.mxu0 0.0
      %1064 = vmatpush.msra.mxu0 0.0
      %1065 = vmatpush.msra.mxu0 0.0
      %1066 = vmatpush.msra.mxu0 0.0
      %1067 = vmatpush.msra.mxu0 0.0
      %1068 = vmatpush.msra.mxu0 %v1012
      %1069 = vmatpush.msra.mxu0 %v1010
      %1070 = vmatmul.f32.gmra.mxu0 %v1014
      %v1071 = vpop.f32.mrf.mxu0
      %v1072 = vadd.f32 0.0, %v1071
      %1073 = vmatmul.f32.gmra.mxu0 %v1017
      %v1074 = vpop.f32.mrf.mxu0
      %v1075 = vadd.f32 0.0, %v1074
      %1076 = vmatmul.f32.gmra.mxu0 %v1020
      %v1077 = vpop.f32.mrf.mxu0
      %v1078 = vadd.f32 0.0, %v1077
      %1079 = vmatmul.f32.gmra.mxu0 %v1023
      %v1080 = vpop.f32.mrf.mxu0
      %v1081 = vadd.f32 0.0, %v1080
      %1082 = vdwg.mxu0
      %v1083 = vmul.f32 %v969, %v1043
      %v1084 = vmul.f32 %v998, %v1072
      %v1085 = vmul.f32 %v972, %v1046
      %v1086 = vmul.f32 %v1001, %v1075
      %v1087 = vmul.f32 %v975, %v1049
      %v1088 = vmul.f32 %v1004, %v1078
      %v1089 = vmul.f32 %v978, %v1052
      %v1090 = vmul.f32 %v1007, %v1081
      %v1091 = vmul.f32 %v395, %v1083
      %v1092 = vmul.f32 %v396, %v1084
      %v1093 = vmul.f32 %v397, %v1085
      %v1094 = vmul.f32 %v398, %v1086
      %v1095 = vmul.f32 %v399, %v1087
      %v1096 = vmul.f32 %v400, %v1088
      %v1097 = vmul.f32 %v401, %v1089
      %v1098 = vmul.f32 %v402, %v1090
      %1099 = vst [vmem:[%s393] sm:$0xff] %v1091
      %1100 = vst [vmem:[%s393 + $0x8] sm:$0xff] %v1092
      %1101 = vst [vmem:[%s393 + $0x10] sm:$0xff] %v1093
      %1102 = vst [vmem:[%s393 + $0x18] sm:$0xff] %v1094
      %1103 = vst [vmem:[%s393 + $0x20] sm:$0xff] %v1095
      %1104 = vst [vmem:[%s393 + $0x28] sm:$0xff] %v1096
      %1105 = vst [vmem:[%s393 + $0x30] sm:$0xff] %v1097
      %1106 = vst [vmem:[%s393 + $0x38] sm:$0xff] %v1098
      %s1107 = smul.u32 4, %s22
      %p1108 = scmp.lt.s32.totalorder %s1107, 7
      %s1109 = scalar_select %p1108, %s1107, 7
      %s1110 = smul.addr %s1109, 2
      %s1111 = smul.addr %s1110, 8
      %s1112 = scalar_lea.vmem %s11, %s1111
      // Predicated region
      $region65: #{coord_att_pallas.1} parent=63 // pred_check
        %p1113 = pneg %p276
      $region66: #{coord_att_pallas.1} parent=63 // pred_check_branch
        %1115 = sbr.rel (%p1113) target = $region68
      $region67: #{coord_att_pallas.1} parent=63 // pred_region
        %s1116 = smul.u32 4, %s22
      $region68: #{coord_att_pallas.1} parent=63 // pred_fallthru
        _
    $region64: #{coord_att_pallas.1} parent=5 // pred_fallthru
      _
    %p1117 = scmp.le.s32.totalorder 2, %s17
    // Predicated region
    $region69: #{coord_att_pallas.1} parent=5 // pred_check
      %p1118 = pneg %p1117
    $region70: #{coord_att_pallas.1} parent=5 // pred_check_branch
      %1120 = sbr.rel (%p1118) target = $region72
    $region71: #{coord_att_pallas.1} parent=5 // pred_region
      %s1121 = ssub.s32 %s17, 2
      // Predicated region
      $region73: #{coord_att_pallas.1} parent=71 // pred_check
        %p1122 = pneg %p282
      $region74: #{coord_att_pallas.1} parent=71 // pred_check_branch
        %1124 = sbr.rel (%p1122) target = $region76
      $region75: #{coord_att_pallas.1} parent=71 // pred_region
        %s1125 = smul.u32 4, %s23
        %p1126 = scmp.lt.s32.totalorder %s1125, 7
        %s1127 = scalar_select %p1126, %s1125, 7
        %s1128 = smul.addr %s1127, 2
        %s1129 = smul.addr %s1128, 8
        %s1130 = scalar_lea.vmem %s11, %s1129
      $region76: #{coord_att_pallas.1} parent=71 // pred_fallthru
        _
    $region72: #{coord_att_pallas.1} parent=5 // pred_fallthru
      _
  $region6: #{coord_att_pallas.1} parent=0 // loop_footer
    %s21 = sadd.s32 1, %s17
  $region7: #{coord_att_pallas.1} parent=0 // loop_footer_branch
    %16 = sbr.rel target = $region3
  $region8: #{coord_att_pallas.1} parent=0 // loop_exit
    _

</llo_original>
